<compile_context>
chip_gen: v5e
topology: v5e:2x2
jax: 0.10.0
libtpu: 0.0.40
codegen_flags: <defaults>
</compile_context>

<pallas_src>
import functools

import jax
import jax.numpy as jnp
from jax.experimental import pallas as pl
from jax.experimental.pallas import tpu as pltpu


def _bert_embeddings_kernel(ids_ref,                      # scalar prefetch (SMEM): (B*S,) int32
                            word_ref, type_ref,           # VMEM-resident tables (V,H), (T,H)
                            pos_ref,                      # VMEM (TS, H) position tile
                            tt_ref,                       # VMEM (TS, 1) int32 token-type ids
                            gamma_ref, beta_ref,          # VMEM (1, H) LayerNorm params
                            out_ref,                      # VMEM out block (TS, H)
                            *, eps, seq_len):
    b = pl.program_id(0)
    si = pl.program_id(1)
    TS, H = out_ref.shape
    base = b * seq_len + si * TS

    # --- Gather phase: word rows only, written straight into the output block.
    # Bounded unroll keeps LLO overlap without exploding vreg pressure.
    def gather_row(s, carry):
        wid = ids_ref[base + s]                       # scalar read from SMEM
        out_ref[pl.ds(s, 1), :] = word_ref[pl.ds(wid, 1), :]
        return carry

    jax.lax.fori_loop(0, TS, gather_row, 0, unroll=8)

    # --- Vectorized token-type contribution (type vocab is tiny, e.g. 2). ---
    tt = tt_ref[...]                                  # (TS, 1) int32
    type_tab = type_ref[...].astype(jnp.float32)      # (T, H), loaded once
    T = type_tab.shape[0]
    type_contrib = (tt == 0).astype(jnp.float32) * type_tab[0:1, :]
    for t in range(1, T):                             # static, T is small
        type_contrib = type_contrib + (tt == t).astype(jnp.float32) * type_tab[t:t + 1, :]

    # --- Vectorized phase: word + pos + type, fused one-pass LayerNorm. ---
    e = out_ref[...] + pos_ref[...] + type_contrib    # (TS, H) f32
    inv_h = jnp.float32(1.0 / H)
    mu = jnp.sum(e, axis=-1, keepdims=True) * inv_h           # (TS, 1)
    ex2 = jnp.sum(e * e, axis=-1, keepdims=True) * inv_h      # (TS, 1)
    var = jnp.maximum(ex2 - mu * mu, 0.0)             # clamp: avoid NaN from cancellation
    y = (e - mu) * jax.lax.rsqrt(var + eps)           # rsqrt -> EUP
    out_ref[...] = y * gamma_ref[...] + beta_ref[...]  # one full-lane tile store


def bert_embeddings(input_ids, token_type_ids,
                    word_emb, pos_emb, type_emb,
                    ln_gamma, ln_beta, eps=1e-12):
    B, S = input_ids.shape
    V, H = word_emb.shape
    MAX_POS = pos_emb.shape[0]
    assert S <= MAX_POS, "sequence length exceeds max_position_embeddings"
    # (8,128) tiling precondition on the sequence axis of the pos/out blocks.
    assert S % 8 == 0 or S == MAX_POS, (
        "seq length must be a multiple of 8 (or equal to max_position_embeddings); pad inputs")

    # Sequence tile: more, smaller grid steps -> better megacore balance and
    # smaller per-step VMEM footprint at long S.
    TS = S if S <= 256 else 256
    assert S % TS == 0, "seq length must be divisible by the sequence tile (256)"

    ids_flat = input_ids.reshape(-1).astype(jnp.int32)          # 1-D SMEM prefetch
    tt3 = token_type_ids.reshape(B, S, 1).astype(jnp.int32)     # (B, S, 1) VMEM blocks

    kernel = functools.partial(_bert_embeddings_kernel, eps=eps, seq_len=S)

    grid_spec = pltpu.PrefetchScalarGridSpec(
        num_scalar_prefetch=1,          # input_ids -> SMEM
        grid=(B, S // TS),
        in_specs=[
            # word / type tables resident in VMEM (toy sizes; see TODO above).
            pl.BlockSpec(memory_space=pltpu.MemorySpace.VMEM),           # word_emb (V, H)
            pl.BlockSpec(memory_space=pltpu.MemorySpace.VMEM),           # type_emb (T, H)
            # position embeddings: one contiguous (TS, H) pipelined tile per step.
            pl.BlockSpec((TS, H), lambda b, si, ids: (si, 0)),           # pos_emb
            # token-type ids for this (batch, seq-tile): (TS, 1) int32 block.
            pl.BlockSpec((None, TS, 1), lambda b, si, ids: (b, si, 0)),  # token_type_ids
            pl.BlockSpec(memory_space=pltpu.MemorySpace.VMEM),           # gamma (1, H)
            pl.BlockSpec(memory_space=pltpu.MemorySpace.VMEM),           # beta  (1, H)
        ],
        out_specs=pl.BlockSpec((None, TS, H), lambda b, si, ids: (b, si, 0)),
    )

    # Explicit VMEM budget: resident tables + double-buffered pipelined blocks
    # + headroom (at production shapes, size this against the chip's VMEM and
    # prefer bf16 / HBM-resident word table; see TODO above).
    resident = 4 * (word_emb.size + type_emb.size + ln_gamma.size + ln_beta.size)
    pipelined = 2 * (TS * H * 4)          # pos tile, double-buffered
    pipelined += 2 * (TS * H * 4)         # out tile, double-buffered
    pipelined += 2 * (TS * 128 * 4)       # tt tile (lane-padded), double-buffered
    vmem_limit = int(resident + pipelined + (16 << 20))

    return pl.pallas_call(
        kernel,
        out_shape=jax.ShapeDtypeStruct((B, S, H), jnp.float32),
        grid_spec=grid_spec,
        compiler_params=pltpu.CompilerParams(
            # All grid steps are independent -> shard across TensorCores.
            dimension_semantics=("parallel", "parallel"),
            vmem_limit_bytes=vmem_limit,
        ),
    )(ids_flat, word_emb, type_emb, pos_emb, tt3, ln_gamma, ln_beta)


def reference(input_ids, token_type_ids, word_emb, pos_emb, type_emb,
              ln_gamma, ln_beta, eps=1e-12):
    B, S = input_ids.shape
    e = (word_emb[input_ids]
         + type_emb[token_type_ids]
         + pos_emb[jnp.arange(S)][None, :, :])
    mu = jnp.mean(e, axis=-1, keepdims=True)
    var = jnp.mean((e - mu) ** 2, axis=-1, keepdims=True)
    return (e - mu) * jax.lax.rsqrt(var + eps) * ln_gamma[0] + ln_beta[0]


if __name__ == "__main__":
    # Small synthetic config
    B, S, H = 2, 8, 128
    VOCAB, MAX_POS, TYPE_VOCAB = 64, 32, 2
    PAD_TOKEN_ID = 0
    EPS = 1e-12

    key = jax.random.PRNGKey(0)
    k_w, k_p, k_t, k_ids, k_tt = jax.random.split(key, 5)

    # Deterministic parameter init (~ N(0, 0.02) like BERT); padding_idx row zeroed.
    word_emb = 0.02 * jax.random.normal(k_w, (VOCAB, H), dtype=jnp.float32)
    word_emb = word_emb.at[PAD_TOKEN_ID].set(0.0)
    pos_emb = 0.02 * jax.random.normal(k_p, (MAX_POS, H), dtype=jnp.float32)
    type_emb = 0.02 * jax.random.normal(k_t, (TYPE_VOCAB, H), dtype=jnp.float32)
    ln_gamma = jnp.ones((1, H), dtype=jnp.float32)
    ln_beta = jnp.zeros((1, H), dtype=jnp.float32)

    input_ids = jax.random.randint(k_ids, (B, S), 0, VOCAB, dtype=jnp.int32)
    token_type_ids = jax.random.randint(k_tt, (B, S), 0, TYPE_VOCAB, dtype=jnp.int32)

    out = bert_embeddings(input_ids, token_type_ids,
                          word_emb, pos_emb, type_emb,
                          ln_gamma, ln_beta, eps=EPS)
    out = jax.block_until_ready(out)

    ref = reference(input_ids, token_type_ids, word_emb, pos_emb, type_emb,
                    ln_gamma, ln_beta, eps=EPS)
    assert out.shape == (B, S, H)
    assert jnp.allclose(out, ref, atol=1e-5, rtol=1e-5), "mismatch vs reference"
    print("KERNEL_OK")
</pallas_src>

<mosaic_0001>
module attributes {stable_mosaic.version = 11 : i64} {
  func.func @_bert_embeddings_kernel(%arg0: i32, %arg1: i32, %arg2: memref<16xi32, #tpu.memory_space<smem>>, %arg3: memref<64x128xf32, #tpu.memory_space<vmem>>, %arg4: memref<2x128xf32, #tpu.memory_space<vmem>>, %arg5: memref<8x128xf32, #tpu.memory_space<vmem>>, %arg6: memref<1x8x1xi32, #tpu.memory_space<vmem>>, %arg7: memref<1x128xf32, #tpu.memory_space<vmem>>, %arg8: memref<1x128xf32, #tpu.memory_space<vmem>>, %arg9: memref<1x8x128xf32, #tpu.memory_space<vmem>>) attributes {dimension_semantics = [#tpu.dimension_semantics<parallel>, #tpu.dimension_semantics<parallel>], iteration_bounds = array<i64: 2, 1>, scalar_prefetch = 1 : i64, scratch_operands = 0 : i64, tpu.core_type = #tpu.core_type<tc>, window_params = [{pipeline_mode = #tpu.pipeline_mode<synchronous>, transform_indices = @transform_0, window_bounds = array<i64: 64, 128>}, {pipeline_mode = #tpu.pipeline_mode<synchronous>, transform_indices = @transform_1, window_bounds = array<i64: 2, 128>}, {transform_indices = @transform_2, window_bounds = array<i64: 8, 128>}, {transform_indices = @transform_3, window_bounds = array<i64: 1, 8, 1>}, {pipeline_mode = #tpu.pipeline_mode<synchronous>, transform_indices = @transform_4, window_bounds = array<i64: 1, 128>}, {pipeline_mode = #tpu.pipeline_mode<synchronous>, transform_indices = @transform_5, window_bounds = array<i64: 1, 128>}, {transform_indices = @transform_6, window_bounds = array<i64: 1, 8, 128>}]} {
    %c8_i32 = arith.constant 8 : i32
    %0 = arith.muli %arg0, %c8_i32 : i32
    %c8_i32_0 = arith.constant 8 : i32
    %1 = arith.muli %arg1, %c8_i32_0 : i32
    %2 = arith.addi %0, %1 : i32
    %c0_i32 = arith.constant 0 : i32
    %3 = arith.addi %2, %c0_i32 : i32
    %4 = arith.index_cast %3 : i32 to index
    %5 = memref.load %arg2[%4] : memref<16xi32, #tpu.memory_space<smem>>
    %6 = arith.index_cast %5 : i32 to index
    %c0 = arith.constant 0 : index
    %7 = vector.load %arg3[%6, %c0] : memref<64x128xf32, #tpu.memory_space<vmem>>, vector<1x128xf32>
    %c0_1 = arith.constant 0 : index
    %8 = arith.index_cast %c0_i32 : i32 to index
    %c0_2 = arith.constant 0 : index
    %9 = vector.load %arg9[%c0_1, %8, %c0_2] : memref<1x8x128xf32, #tpu.memory_space<vmem>>, vector<1x1x128xf32>
    %10 = vector.shape_cast %9 : vector<1x1x128xf32> to vector<1x128xf32>
    %11 = vector.shape_cast %7 : vector<1x128xf32> to vector<1x1x128xf32>
    tpu.vector_store %arg9[%c0_1, %8, %c0_2], %11 {strides = array<i32>} : memref<1x8x128xf32, #tpu.memory_space<vmem>>, vector<1x1x128xf32>,
    %c1_i32 = arith.constant 1 : i32
    %12 = arith.addi %2, %c1_i32 : i32
    %13 = arith.index_cast %12 : i32 to index
    %14 = memref.load %arg2[%13] : memref<16xi32, #tpu.memory_space<smem>>
    %15 = arith.index_cast %14 : i32 to index
    %c0_3 = arith.constant 0 : index
    %16 = vector.load %arg3[%15, %c0_3] : memref<64x128xf32, #tpu.memory_space<vmem>>, vector<1x128xf32>
    %c0_4 = arith.constant 0 : index
    %17 = arith.index_cast %c1_i32 : i32 to index
    %c0_5 = arith.constant 0 : index
    %18 = vector.load %arg9[%c0_4, %17, %c0_5] : memref<1x8x128xf32, #tpu.memory_space<vmem>>, vector<1x1x128xf32>
    %19 = vector.shape_cast %18 : vector<1x1x128xf32> to vector<1x128xf32>
    %20 = vector.shape_cast %16 : vector<1x128xf32> to vector<1x1x128xf32>
    tpu.vector_store %arg9[%c0_4, %17, %c0_5], %20 {strides = array<i32>} : memref<1x8x128xf32, #tpu.memory_space<vmem>>, vector<1x1x128xf32>,
    %c2_i32 = arith.constant 2 : i32
    %21 = arith.addi %2, %c2_i32 : i32
    %22 = arith.index_cast %21 : i32 to index
    %23 = memref.load %arg2[%22] : memref<16xi32, #tpu.memory_space<smem>>
    %24 = arith.index_cast %23 : i32 to index
    %c0_6 = arith.constant 0 : index
    %25 = vector.load %arg3[%24, %c0_6] : memref<64x128xf32, #tpu.memory_space<vmem>>, vector<1x128xf32>
    %c0_7 = arith.constant 0 : index
    %26 = arith.index_cast %c2_i32 : i32 to index
    %c0_8 = arith.constant 0 : index
    %27 = vector.load %arg9[%c0_7, %26, %c0_8] : memref<1x8x128xf32, #tpu.memory_space<vmem>>, vector<1x1x128xf32>
    %28 = vector.shape_cast %27 : vector<1x1x128xf32> to vector<1x128xf32>
    %29 = vector.shape_cast %25 : vector<1x128xf32> to vector<1x1x128xf32>
    tpu.vector_store %arg9[%c0_7, %26, %c0_8], %29 {strides = array<i32>} : memref<1x8x128xf32, #tpu.memory_space<vmem>>, vector<1x1x128xf32>,
    %c3_i32 = arith.constant 3 : i32
    %30 = arith.addi %2, %c3_i32 : i32
    %31 = arith.index_cast %30 : i32 to index
    %32 = memref.load %arg2[%31] : memref<16xi32, #tpu.memory_space<smem>>
    %33 = arith.index_cast %32 : i32 to index
    %c0_9 = arith.constant 0 : index
    %34 = vector.load %arg3[%33, %c0_9] : memref<64x128xf32, #tpu.memory_space<vmem>>, vector<1x128xf32>
    %c0_10 = arith.constant 0 : index
    %35 = arith.index_cast %c3_i32 : i32 to index
    %c0_11 = arith.constant 0 : index
    %36 = vector.load %arg9[%c0_10, %35, %c0_11] : memref<1x8x128xf32, #tpu.memory_space<vmem>>, vector<1x1x128xf32>
    %37 = vector.shape_cast %36 : vector<1x1x128xf32> to vector<1x128xf32>
    %38 = vector.shape_cast %34 : vector<1x128xf32> to vector<1x1x128xf32>
    tpu.vector_store %arg9[%c0_10, %35, %c0_11], %38 {strides = array<i32>} : memref<1x8x128xf32, #tpu.memory_space<vmem>>, vector<1x1x128xf32>,
    %c4_i32 = arith.constant 4 : i32
    %39 = arith.addi %2, %c4_i32 : i32
    %40 = arith.index_cast %39 : i32 to index
    %41 = memref.load %arg2[%40] : memref<16xi32, #tpu.memory_space<smem>>
    %42 = arith.index_cast %41 : i32 to index
    %c0_12 = arith.constant 0 : index
    %43 = vector.load %arg3[%42, %c0_12] : memref<64x128xf32, #tpu.memory_space<vmem>>, vector<1x128xf32>
    %c0_13 = arith.constant 0 : index
    %44 = arith.index_cast %c4_i32 : i32 to index
    %c0_14 = arith.constant 0 : index
    %45 = vector.load %arg9[%c0_13, %44, %c0_14] : memref<1x8x128xf32, #tpu.memory_space<vmem>>, vector<1x1x128xf32>
    %46 = vector.shape_cast %45 : vector<1x1x128xf32> to vector<1x128xf32>
    %47 = vector.shape_cast %43 : vector<1x128xf32> to vector<1x1x128xf32>
    tpu.vector_store %arg9[%c0_13, %44, %c0_14], %47 {strides = array<i32>} : memref<1x8x128xf32, #tpu.memory_space<vmem>>, vector<1x1x128xf32>,
    %c5_i32 = arith.constant 5 : i32
    %48 = arith.addi %2, %c5_i32 : i32
    %49 = arith.index_cast %48 : i32 to index
    %50 = memref.load %arg2[%49] : memref<16xi32, #tpu.memory_space<smem>>
    %51 = arith.index_cast %50 : i32 to index
    %c0_15 = arith.constant 0 : index
    %52 = vector.load %arg3[%51, %c0_15] : memref<64x128xf32, #tpu.memory_space<vmem>>, vector<1x128xf32>
    %c0_16 = arith.constant 0 : index
    %53 = arith.index_cast %c5_i32 : i32 to index
    %c0_17 = arith.constant 0 : index
    %54 = vector.load %arg9[%c0_16, %53, %c0_17] : memref<1x8x128xf32, #tpu.memory_space<vmem>>, vector<1x1x128xf32>
    %55 = vector.shape_cast %54 : vector<1x1x128xf32> to vector<1x128xf32>
    %56 = vector.shape_cast %52 : vector<1x128xf32> to vector<1x1x128xf32>
    tpu.vector_store %arg9[%c0_16, %53, %c0_17], %56 {strides = array<i32>} : memref<1x8x128xf32, #tpu.memory_space<vmem>>, vector<1x1x128xf32>,
    %c6_i32 = arith.constant 6 : i32
    %57 = arith.addi %2, %c6_i32 : i32
    %58 = arith.index_cast %57 : i32 to index
    %59 = memref.load %arg2[%58] : memref<16xi32, #tpu.memory_space<smem>>
    %60 = arith.index_cast %59 : i32 to index
    %c0_18 = arith.constant 0 : index
    %61 = vector.load %arg3[%60, %c0_18] : memref<64x128xf32, #tpu.memory_space<vmem>>, vector<1x128xf32>
    %c0_19 = arith.constant 0 : index
    %62 = arith.index_cast %c6_i32 : i32 to index
    %c0_20 = arith.constant 0 : index
    %63 = vector.load %arg9[%c0_19, %62, %c0_20] : memref<1x8x128xf32, #tpu.memory_space<vmem>>, vector<1x1x128xf32>
    %64 = vector.shape_cast %63 : vector<1x1x128xf32> to vector<1x128xf32>
    %65 = vector.shape_cast %61 : vector<1x128xf32> to vector<1x1x128xf32>
    tpu.vector_store %arg9[%c0_19, %62, %c0_20], %65 {strides = array<i32>} : memref<1x8x128xf32, #tpu.memory_space<vmem>>, vector<1x1x128xf32>,
    %c7_i32 = arith.constant 7 : i32
    %66 = arith.addi %2, %c7_i32 : i32
    %67 = arith.index_cast %66 : i32 to index
    %68 = memref.load %arg2[%67] : memref<16xi32, #tpu.memory_space<smem>>
    %69 = arith.index_cast %68 : i32 to index
    %c0_21 = arith.constant 0 : index
    %70 = vector.load %arg3[%69, %c0_21] : memref<64x128xf32, #tpu.memory_space<vmem>>, vector<1x128xf32>
    %c0_22 = arith.constant 0 : index
    %71 = arith.index_cast %c7_i32 : i32 to index
    %c0_23 = arith.constant 0 : index
    %72 = vector.load %arg9[%c0_22, %71, %c0_23] : memref<1x8x128xf32, #tpu.memory_space<vmem>>, vector<1x1x128xf32>
    %73 = vector.shape_cast %72 : vector<1x1x128xf32> to vector<1x128xf32>
    %74 = vector.shape_cast %70 : vector<1x128xf32> to vector<1x1x128xf32>
    tpu.vector_store %arg9[%c0_22, %71, %c0_23], %74 {strides = array<i32>} : memref<1x8x128xf32, #tpu.memory_space<vmem>>, vector<1x1x128xf32>,
    %c8_i32_24 = arith.constant 8 : i32
    %c0_25 = arith.constant 0 : index
    %c0_26 = arith.constant 0 : index
    %c0_27 = arith.constant 0 : index
    %75 = vector.load %arg6[%c0_25, %c0_26, %c0_27] : memref<1x8x1xi32, #tpu.memory_space<vmem>>, vector<1x8x1xi32>
    %76 = vector.shape_cast %75 : vector<1x8x1xi32> to vector<8x1xi32>
    %c0_28 = arith.constant 0 : index
    %c0_29 = arith.constant 0 : index
    %77 = vector.load %arg4[%c0_28, %c0_29] : memref<2x128xf32, #tpu.memory_space<vmem>>, vector<2x128xf32>
    %c0_i32_30 = arith.constant 0 : i32
    %78 = vector.broadcast %c0_i32_30 : i32 to vector<8x1xi32>
    %79 = arith.cmpi eq, %76, %78 : vector<8x1xi32>
    %80 = arith.extui %79 : vector<8x1xi1> to vector<8x1xi32>
    %81 = arith.sitofp %80 : vector<8x1xi32> to vector<8x1xf32>
    %82 = vector.extract_strided_slice %77 {offsets = [0, 0], sizes = [1, 128], strides = [1, 1]} : vector<2x128xf32> to vector<1x128xf32>
    %83 = vector.broadcast %81 : vector<8x1xf32> to vector<8x128xf32>
    %84 = vector.broadcast %82 : vector<1x128xf32> to vector<8x128xf32>
    %85 = arith.mulf %83, %84 : vector<8x128xf32>
    %c1_i32_31 = arith.constant 1 : i32
    %86 = vector.broadcast %c1_i32_31 : i32 to vector<8x1xi32>
    %87 = arith.cmpi eq, %76, %86 : vector<8x1xi32>
    %88 = arith.extui %87 : vector<8x1xi1> to vector<8x1xi32>
    %89 = arith.sitofp %88 : vector<8x1xi32> to vector<8x1xf32>
    %90 = vector.extract_strided_slice %77 {offsets = [1, 0], sizes = [1, 128], strides = [1, 1]} : vector<2x128xf32> to vector<1x128xf32>
    %91 = vector.broadcast %89 : vector<8x1xf32> to vector<8x128xf32>
    %92 = vector.broadcast %90 : vector<1x128xf32> to vector<8x128xf32>
    %93 = arith.mulf %91, %92 : vector<8x128xf32>
    %94 = arith.addf %85, %93 : vector<8x128xf32>
    %c0_32 = arith.constant 0 : index
    %c0_33 = arith.constant 0 : index
    %c0_34 = arith.constant 0 : index
    %95 = vector.load %arg9[%c0_32, %c0_33, %c0_34] : memref<1x8x128xf32, #tpu.memory_space<vmem>>, vector<1x8x128xf32>
    %96 = vector.shape_cast %95 : vector<1x8x128xf32> to vector<8x128xf32>
    %c0_35 = arith.constant 0 : index
    %c0_36 = arith.constant 0 : index
    %97 = vector.load %arg5[%c0_35, %c0_36] : memref<8x128xf32, #tpu.memory_space<vmem>>, vector<8x128xf32>
    %98 = arith.addf %96, %97 : vector<8x128xf32>
    %99 = arith.addf %98, %94 : vector<8x128xf32>
    %cst = arith.constant dense<0.000000e+00> : vector<8xf32>
    %100 = vector.multi_reduction <add>, %99, %cst [1] : vector<8x128xf32> to vector<8xf32>
    %101 = vector.shape_cast %100 : vector<8xf32> to vector<8x1xf32>
    %cst_37 = arith.constant 7.812500e-03 : f32
    %102 = vector.broadcast %cst_37 : f32 to vector<8x1xf32>
    %103 = arith.mulf %101, %102 : vector<8x1xf32>
    %104 = arith.mulf %99, %99 : vector<8x128xf32>
    %cst_38 = arith.constant dense<0.000000e+00> : vector<8xf32>
    %105 = vector.multi_reduction <add>, %104, %cst_38 [1] : vector<8x128xf32> to vector<8xf32>
    %106 = vector.shape_cast %105 : vector<8xf32> to vector<8x1xf32>
    %cst_39 = arith.constant 7.812500e-03 : f32
    %107 = vector.broadcast %cst_39 : f32 to vector<8x1xf32>
    %108 = arith.mulf %106, %107 : vector<8x1xf32>
    %109 = arith.mulf %103, %103 : vector<8x1xf32>
    %110 = arith.subf %108, %109 : vector<8x1xf32>
    %cst_40 = arith.constant 0.000000e+00 : f32
    %111 = vector.broadcast %cst_40 : f32 to vector<8x1xf32>
    %112 = arith.maximumf %110, %111 : vector<8x1xf32>
    %113 = vector.broadcast %103 : vector<8x1xf32> to vector<8x128xf32>
    %114 = arith.subf %99, %113 : vector<8x128xf32>
    %cst_41 = arith.constant 9.99999996E-13 : f32
    %115 = vector.broadcast %cst_41 : f32 to vector<8x1xf32>
    %116 = arith.addf %112, %115 : vector<8x1xf32>
    %117 = math.rsqrt %116 : vector<8x1xf32>
    %118 = vector.broadcast %117 : vector<8x1xf32> to vector<8x128xf32>
    %119 = arith.mulf %114, %118 : vector<8x128xf32>
    %c0_42 = arith.constant 0 : index
    %c0_43 = arith.constant 0 : index
    %120 = vector.load %arg7[%c0_42, %c0_43] : memref<1x128xf32, #tpu.memory_space<vmem>>, vector<1x128xf32>
    %121 = vector.broadcast %120 : vector<1x128xf32> to vector<8x128xf32>
    %122 = arith.mulf %119, %121 : vector<8x128xf32>
    %c0_44 = arith.constant 0 : index
    %c0_45 = arith.constant 0 : index
    %123 = vector.load %arg8[%c0_44, %c0_45] : memref<1x128xf32, #tpu.memory_space<vmem>>, vector<1x128xf32>
    %124 = vector.broadcast %123 : vector<1x128xf32> to vector<8x128xf32>
    %125 = arith.addf %122, %124 : vector<8x128xf32>
    %c0_46 = arith.constant 0 : index
    %c0_47 = arith.constant 0 : index
    %c0_48 = arith.constant 0 : index
    %126 = vector.load %arg9[%c0_46, %c0_47, %c0_48] : memref<1x8x128xf32, #tpu.memory_space<vmem>>, vector<1x8x128xf32>
    %127 = vector.shape_cast %126 : vector<1x8x128xf32> to vector<8x128xf32>
    %128 = vector.shape_cast %125 : vector<8x128xf32> to vector<1x8x128xf32>
    tpu.vector_store %arg9[%c0_46, %c0_47, %c0_48], %128 {strides = array<i32>} : memref<1x8x128xf32, #tpu.memory_space<vmem>>, vector<1x8x128xf32>,
    return
  }
  func.func @transform_0(%arg0: i32, %arg1: i32, %arg2: memref<16xi32, #tpu.memory_space<smem>>) -> (i32, i32) {
    %c0_i32 = arith.constant 0 : i32
    %c0_i32_0 = arith.constant 0 : i32
    %c0_i32_1 = arith.constant 0 : i32
    return %c0_i32, %c0_i32_0 : i32, i32
  }
  func.func @transform_1(%arg0: i32, %arg1: i32, %arg2: memref<16xi32, #tpu.memory_space<smem>>) -> (i32, i32) {
    %c0_i32 = arith.constant 0 : i32
    %c0_i32_0 = arith.constant 0 : i32
    %c0_i32_1 = arith.constant 0 : i32
    return %c0_i32, %c0_i32_0 : i32, i32
  }
  func.func @transform_2(%arg0: i32, %arg1: i32, %arg2: memref<16xi32, #tpu.memory_space<smem>>) -> (i32, i32) {
    %c0_i32 = arith.constant 0 : i32
    %c0_i32_0 = arith.constant 0 : i32
    return %arg1, %c0_i32 : i32, i32
  }
  func.func @transform_3(%arg0: i32, %arg1: i32, %arg2: memref<16xi32, #tpu.memory_space<smem>>) -> (i32, i32, i32) {
    %c0_i32 = arith.constant 0 : i32
    %c0_i32_0 = arith.constant 0 : i32
    return %arg0, %arg1, %c0_i32 : i32, i32, i32
  }
  func.func @transform_4(%arg0: i32, %arg1: i32, %arg2: memref<16xi32, #tpu.memory_space<smem>>) -> (i32, i32) {
    %c0_i32 = arith.constant 0 : i32
    %c0_i32_0 = arith.constant 0 : i32
    %c0_i32_1 = arith.constant 0 : i32
    return %c0_i32, %c0_i32_0 : i32, i32
  }
  func.func @transform_5(%arg0: i32, %arg1: i32, %arg2: memref<16xi32, #tpu.memory_space<smem>>) -> (i32, i32) {
    %c0_i32 = arith.constant 0 : i32
    %c0_i32_0 = arith.constant 0 : i32
    %c0_i32_1 = arith.constant 0 : i32
    return %c0_i32, %c0_i32_0 : i32, i32
  }
  func.func @transform_6(%arg0: i32, %arg1: i32, %arg2: memref<16xi32, #tpu.memory_space<smem>>) -> (i32, i32, i32) {
    %c0_i32 = arith.constant 0 : i32
    %c0_i32_0 = arith.constant 0 : i32
    return %arg0, %arg1, %c0_i32 : i32, i32, i32
  }
}

</mosaic_0001>

<llo_original>
// kernel: tpu_custom_call.1
$region0: #{tpu_custom_call.1}
  #allocation0 [shape = 'u32[]', space=smem, size = 0x4, offset = 0x4, fixed_abs, tag = 'smem constant byte address 0x4 - core index']
  #allocation1 [shape = 'u32[72,128]{1,0:T(1,128)}', space=vmem, size = 0x9000, scoped, tag = 'internal scratch']
  #allocation2 [shape = 's32[1]{0}', space=sflag, size = 0x4, scoped, tag = 'scoped memory for tpu_custom_call.1']
  #allocation3 [shape = 'u8[512]{0}', space=smem, size = 0x200, scoped, tag = 'prefetched SMEM operand 0']
  %s0 = inlined_call_operand.vmem [shape: s32[16], index: 0, kind: input, shape index: {}]
  %s1 = inlined_call_operand.hbm [shape: f32[64,128], index: 1, kind: input, shape index: {}]
  %s2 = inlined_call_operand.vmem [shape: f32[2,128], index: 2, kind: input, shape index: {}]
  %s3 = inlined_call_operand.hbm [shape: f32[32,128], index: 3, kind: input, shape index: {}]
  %s4 = inlined_call_operand.vmem [shape: s32[2,8,1], index: 4, kind: input, shape index: {}]
  %s5 = inlined_call_operand.vmem [shape: f32[1,128], index: 5, kind: input, shape index: {}]
  %s6 = inlined_call_operand.vmem [shape: f32[1,128], index: 6, kind: input, shape index: {}]
  %s7 = inlined_call_operand.hbm [shape: f32[2,8,128], index: 7, kind: output, shape index: {}]
  %s8 = sld [smem:[#allocation0]]
  $region65: #{tpu_custom_call.1} parent=0
    _
  %s10 = ssub.s32 1, %s8
  %s11 = scalar_select 0, %s10, %s8
  %s13 = sshll.u32 %s0, 4
  %s14 = int_to_ptr.vmem [resolvable:$true] %s13
  %16 = dma.vmem_to_smem %s14, 16, [#allocation3], [#allocation2]
  %18 = dma.done [#allocation2], 16
  %19 = sfence
  $region1: #{tpu_custom_call.1} parent=0
    #allocation4 [shape = 'u8[32768]{0}', space=vmem, size = 0x8000, scoped, tag = 'input window, operand 1, single buffered']
    #allocation5 [shape = 's32[2]{0}', space=sflag, size = 0x8, scoped, tag = 'scoped memory for tpu_custom_call.1']
    #allocation6 [shape = 's32[2]{0}', space=sflag, size = 0x8, scoped, tag = 'scoped memory for tpu_custom_call.1']
    #allocation7 [shape = 'u8[4096]{0}', space=vmem, size = 0x1000, scoped, tag = 'input window, operand 3, single buffered']
    #allocation8 [shape = 's32[1]{0}', space=sflag, size = 0x4, scoped, tag = 'scoped memory for tpu_custom_call.1']
    #allocation9 [shape = 'u8[8192]{0}', space=vmem, size = 0x2000, scoped, tag = 'output window, operand 0']
    %20 = vsyncpa [#allocation5], 0
    %21 = vsyncpa [#allocation8], 0
    %22 = vsyncpa [#allocation6], 0
    %s23 = scalar_lea.sflag [#allocation6], 1
    %24 = vsyncpa %s23, 0
    loop: start=0, step=1, limit=4
    $region2: #{tpu_custom_call.1} parent=1 // loop_pre_header
      _
    $region3: #{tpu_custom_call.1} parent=1 // loop_header
      %s26 = sphi 0, %s30
      %p27 = scmp.ge.s32.totalorder %s26, 4
      %s33 = sphi 0, %s45
      %s34 = sphi 0, %s41
      %s35 = sphi 0, %s33
      %s36 = sphi 0, %s34
      %s37 = sphi 0, %s35
      %s38 = sphi 0, %s36
      %s46 = sphi 0, %s46
      %s48 = sphi 0, %s46
      %s49 = sphi 0, %s48
      %s63 = sphi 0, %s49
      %s67 = sphi 0, %s67
      %s69 = sphi 0, %s67
      %s70 = sphi 0, %s69
      %s84 = sphi 0, %s70
      %s90 = sphi 0, %s92
      %s93 = sphi 0, %s90
      %s94 = sphi 0, %s93
      %s110 = sphi 0, %s94
      %s118 = sphi 0, %s120
      %s121 = sphi 0, %s118
      %s122 = sphi 0, %s121
      %s138 = sphi 0, %s122
      %s142 = sphi 0, %s142
      %s144 = sphi 0, %s142
      %s145 = sphi 0, %s144
      %s159 = sphi 0, %s145
      %s163 = sphi 0, %s163
      %s165 = sphi 0, %s163
      %s166 = sphi 0, %s165
      %s180 = sphi 0, %s166
      %s188 = sphi 0, %s190
      %s191 = sphi 0, %s188
      %s192 = sphi 0, %s191
      %s208 = sphi 0, %s192
    $region4: #{tpu_custom_call.1} parent=1 // loop_header_branch
      %29 = sbr.rel (%p27) target = $region8
    $region5: #{tpu_custom_call.1} parent=1 // loop_body
      %s31 = ssub.s32 %s26, 1
      %s32 = ssub.s32 %s26, 2
      %s39 = sadd.s32 1, %s34
      %p40 = scmp.ge.s32.totalorder %s39, 1
      %s41 = scalar_select %p40, 0, %s39
      %s42 = sadd.s32 1, %s33
      %s43 = scalar_select %p40, %s42, %s33
      %p44 = scmp.ge.s32.totalorder %s43, 2
      %s45 = scalar_select %p44, 0, %s43
      %s47 = sadd.s32 %s46, 1
      %p50 = scmp.eq.s32.totalorder %s26, 1
      %p51 = scmp.ne.s32.totalorder %s46, %s48
      %p52 = scmp.eq.s32.totalorder %s26, 0
      %p53 = por %p51, %p52
      %p54 = scmp.ne.s32.totalorder %s46, %s48
      %p55 = scmp.eq.s32.totalorder %s31, 1
      %p56 = por %p54, %p55
      %p57 = scmp.ne.s32.totalorder %s48, %s49
      %p58 = scmp.eq.s32.totalorder %s31, 0
      %p59 = por %p57, %p58
      %p60 = scmp.ne.s32.totalorder %s48, %s49
      %p61 = scmp.eq.s32.totalorder %s32, 1
      %p62 = por %p60, %p61
      %p64 = scmp.ne.s32.totalorder %s49, %s63
      %p65 = scmp.eq.s32.totalorder %s32, 0
      %p66 = por %p64, %p65
      %s68 = sadd.s32 %s67, 1
      %p71 = scmp.eq.s32.totalorder %s26, 1
      %p72 = scmp.ne.s32.totalorder %s67, %s69
      %p73 = scmp.eq.s32.totalorder %s26, 0
      %p74 = por %p72, %p73
      %p75 = scmp.ne.s32.totalorder %s67, %s69
      %p76 = scmp.eq.s32.totalorder %s31, 1
      %p77 = por %p75, %p76
      %p78 = scmp.ne.s32.totalorder %s69, %s70
      %p79 = scmp.eq.s32.totalorder %s31, 0
      %p80 = por %p78, %p79
      %p81 = scmp.ne.s32.totalorder %s69, %s70
      %p82 = scmp.eq.s32.totalorder %s32, 1
      %p83 = por %p81, %p82
      %p85 = scmp.ne.s32.totalorder %s70, %s84
      %p86 = scmp.eq.s32.totalorder %s32, 0
      %p87 = por %p85, %p86
      %s88 = ssub.s32 %s34, %s41
      %p89 = scmp.eq.s32.totalorder %s88, 0
      %s91 = sadd.s32 %s90, 1
      %s92 = scalar_select %p89, %s90, %s91
      %p95 = pneg %p89
      %p96 = scmp.eq.s32.totalorder %s26, 1
      %p97 = por %p95, %p96
      %p98 = scmp.ne.s32.totalorder %s90, %s93
      %p99 = scmp.eq.s32.totalorder %s26, 0
      %p100 = por %p98, %p99
      %p101 = scmp.ne.s32.totalorder %s90, %s93
      %p102 = scmp.eq.s32.totalorder %s31, 1
      %p103 = por %p101, %p102
      %p104 = scmp.ne.s32.totalorder %s93, %s94
      %p105 = scmp.eq.s32.totalorder %s31, 0
      %p106 = por %p104, %p105
      %p107 = scmp.ne.s32.totalorder %s93, %s94
      %p108 = scmp.eq.s32.totalorder %s32, 1
      %p109 = por %p107, %p108
      %p111 = scmp.ne.s32.totalorder %s94, %s110
      %p112 = scmp.eq.s32.totalorder %s32, 0
      %p113 = por %p111, %p112
      %s114 = ssub.s32 %s33, %s45
      %s115 = ssub.s32 %s34, %s41
      %s116 = sor.u32 %s114, %s115
      %p117 = scmp.eq.s32.totalorder %s116, 0
      %s119 = sadd.s32 %s118, 1
      %s120 = scalar_select %p117, %s118, %s119
      %p123 = pneg %p117
      %p124 = scmp.eq.s32.totalorder %s26, 1
      %p125 = por %p123, %p124
      %p126 = scmp.ne.s32.totalorder %s118, %s121
      %p127 = scmp.eq.s32.totalorder %s26, 0
      %p128 = por %p126, %p127
      %p129 = scmp.ne.s32.totalorder %s118, %s121
      %p130 = scmp.eq.s32.totalorder %s31, 1
      %p131 = por %p129, %p130
      %p132 = scmp.ne.s32.totalorder %s121, %s122
      %p133 = scmp.eq.s32.totalorder %s31, 0
      %p134 = por %p132, %p133
      %p135 = scmp.ne.s32.totalorder %s121, %s122
      %p136 = scmp.eq.s32.totalorder %s32, 1
      %p137 = por %p135, %p136
      %p139 = scmp.ne.s32.totalorder %s122, %s138
      %p140 = scmp.eq.s32.totalorder %s32, 0
      %p141 = por %p139, %p140
      %s143 = sadd.s32 %s142, 1
      %p146 = scmp.eq.s32.totalorder %s26, 1
      %p147 = scmp.ne.s32.totalorder %s142, %s144
      %p148 = scmp.eq.s32.totalorder %s26, 0
      %p149 = por %p147, %p148
      %p150 = scmp.ne.s32.totalorder %s142, %s144
      %p151 = scmp.eq.s32.totalorder %s31, 1
      %p152 = por %p150, %p151
      %p153 = scmp.ne.s32.totalorder %s144, %s145
      %p154 = scmp.eq.s32.totalorder %s31, 0
      %p155 = por %p153, %p154
      %p156 = scmp.ne.s32.totalorder %s144, %s145
      %p157 = scmp.eq.s32.totalorder %s32, 1
      %p158 = por %p156, %p157
      %p160 = scmp.ne.s32.totalorder %s145, %s159
      %p161 = scmp.eq.s32.totalorder %s32, 0
      %p162 = por %p160, %p161
      %s164 = sadd.s32 %s163, 1
      %p167 = scmp.eq.s32.totalorder %s26, 1
      %p168 = scmp.ne.s32.totalorder %s163, %s165
      %p169 = scmp.eq.s32.totalorder %s26, 0
      %p170 = por %p168, %p169
      %p171 = scmp.ne.s32.totalorder %s163, %s165
      %p172 = scmp.eq.s32.totalorder %s31, 1
      %p173 = por %p171, %p172
      %p174 = scmp.ne.s32.totalorder %s165, %s166
      %p175 = scmp.eq.s32.totalorder %s31, 0
      %p176 = por %p174, %p175
      %p177 = scmp.ne.s32.totalorder %s165, %s166
      %p178 = scmp.eq.s32.totalorder %s32, 1
      %p179 = por %p177, %p178
      %p181 = scmp.ne.s32.totalorder %s166, %s180
      %p182 = scmp.eq.s32.totalorder %s32, 0
      %p183 = por %p181, %p182
      %s184 = ssub.s32 %s33, %s45
      %s185 = ssub.s32 %s34, %s41
      %s186 = sor.u32 %s184, %s185
      %p187 = scmp.eq.s32.totalorder %s186, 0
      %s189 = sadd.s32 %s188, 1
      %s190 = scalar_select %p187, %s188, %s189
      %p193 = pneg %p187
      %p194 = scmp.eq.s32.totalorder %s26, 1
      %p195 = por %p193, %p194
      %p196 = scmp.ne.s32.totalorder %s188, %s191
      %p197 = scmp.eq.s32.totalorder %s26, 0
      %p198 = por %p196, %p197
      %p199 = scmp.ne.s32.totalorder %s188, %s191
      %p200 = scmp.eq.s32.totalorder %s31, 1
      %p201 = por %p199, %p200
      %p202 = scmp.ne.s32.totalorder %s191, %s192
      %p203 = scmp.eq.s32.totalorder %s31, 0
      %p204 = por %p202, %p203
      %p205 = scmp.ne.s32.totalorder %s191, %s192
      %p206 = scmp.eq.s32.totalorder %s32, 1
      %p207 = por %p205, %p206
      %p209 = scmp.ne.s32.totalorder %s192, %s208
      %p210 = scmp.eq.s32.totalorder %s32, 0
      %p211 = por %p209, %p210
      %p212 = scmp.le.s32.totalorder 1, %s26
      %p213 = scmp.lt.s32.totalorder %s26, 3
      %p214 = pnand %p212, %p213
      %p215 = pneg %p214
      // Predicated region
      $region9: #{tpu_custom_call.1} parent=5 // pred_check
        _
      $region10: #{tpu_custom_call.1} parent=5 // pred_check_branch
        %217 = sbr.rel (%p214) target = $region12
      $region11: #{tpu_custom_call.1} parent=5 // pred_region
        %s218 = ssub.s32 %s26, 1
        // Predicated region
        $region13: #{tpu_custom_call.1} parent=11 // pred_check
          %p219 = pneg %p59
        $region14: #{tpu_custom_call.1} parent=11 // pred_check_branch
          %221 = sbr.rel (%p219) target = $region16
        $region15: #{tpu_custom_call.1} parent=11 // pred_region
          %223 = vsyncadd [#allocation5], 0
          %s224 = sshll.u32 %s1, 4
          %s225 = int_to_ptr.hbm [resolvable:$true] %s224
          %s226 = sshll.u32 [#allocation4], 4
          %s227 = int_to_ptr.vmem [resolvable:$true] %s226
          %232 = dma.hbm_to_vmem [thread:$0]  %s225, 1024, %s227, [#allocation5], 128, 128, 8
        $region16: #{tpu_custom_call.1} parent=11 // pred_fallthru
          _
        // Predicated region
        $region17: #{tpu_custom_call.1} parent=11 // pred_check
          %p233 = pneg %p80
        $region18: #{tpu_custom_call.1} parent=11 // pred_check_branch
          %235 = sbr.rel (%p233) target = $region20
        $region19: #{tpu_custom_call.1} parent=11 // pred_region
          _
        $region20: #{tpu_custom_call.1} parent=11 // pred_fallthru
          _
        // Predicated region
        $region21: #{tpu_custom_call.1} parent=11 // pred_check
          %p236 = pneg %p106
        $region22: #{tpu_custom_call.1} parent=11 // pred_check_branch
          %238 = sbr.rel (%p236) target = $region24
        $region23: #{tpu_custom_call.1} parent=11 // pred_region
          %240 = vsyncadd [#allocation8], 0
          %s241 = smul.addr %s36, 8
          %s242 = scalar_lea.hbm %s3, %s241
          %s244 = sshll.u32 %s242, 4
          %s245 = int_to_ptr.hbm [resolvable:$true] %s244
          %s246 = sshll.u32 [#allocation7], 4
          %s247 = int_to_ptr.vmem [resolvable:$true] %s246
          %249 = dma.hbm_to_vmem [thread:$0]  %s245, 128, %s247, [#allocation8]
        $region24: #{tpu_custom_call.1} parent=11 // pred_fallthru
          _
        // Predicated region
        $region25: #{tpu_custom_call.1} parent=11 // pred_check
          %p250 = pneg %p155
        $region26: #{tpu_custom_call.1} parent=11 // pred_check_branch
          %252 = sbr.rel (%p250) target = $region28
        $region27: #{tpu_custom_call.1} parent=11 // pred_region
          _
        $region28: #{tpu_custom_call.1} parent=11 // pred_fallthru
          _
        // Predicated region
        $region29: #{tpu_custom_call.1} parent=11 // pred_check
          %p253 = pneg %p176
        $region30: #{tpu_custom_call.1} parent=11 // pred_check_branch
          %255 = sbr.rel (%p253) target = $region32
        $region31: #{tpu_custom_call.1} parent=11 // pred_region
          _
        $region32: #{tpu_custom_call.1} parent=11 // pred_fallthru
          _
      $region12: #{tpu_custom_call.1} parent=5 // pred_fallthru
        _
      %p256 = scmp.lt.s32.totalorder %s26, 2
      // Predicated region
      $region33: #{tpu_custom_call.1} parent=5 // pred_check
        %p257 = pneg %p256
      $region34: #{tpu_custom_call.1} parent=5 // pred_check_branch
        %259 = sbr.rel (%p257) target = $region36
      $region35: #{tpu_custom_call.1} parent=5 // pred_region
        // Predicated region
        $region37: #{tpu_custom_call.1} parent=35 // pred_check
          %p260 = pneg %p128
        $region38: #{tpu_custom_call.1} parent=35 // pred_check_branch
          %262 = sbr.rel (%p260) target = $region40
        $region39: #{tpu_custom_call.1} parent=35 // pred_region
          %p263 = scmp.lt.s32.totalorder %s33, 1
          %s264 = scalar_select %p263, %s33, 1
          %p265 = scmp.lt.s32.totalorder %s34, 0
          %s266 = scalar_select %p265, %s34, 0
          %s267 = sadd.s32 %s266, %s264
          %s268 = smul.addr %s267, 8
          %s269 = scalar_lea.vmem %s4, %s268
        $region40: #{tpu_custom_call.1} parent=35 // pred_fallthru
          _
      $region36: #{tpu_custom_call.1} parent=5 // pred_fallthru
        _
      %p270 = scmp.le.s32.totalorder 1, %s26
      %p271 = scmp.lt.s32.totalorder %s26, 3
      %p272 = pnand %p270, %p271
      %p273 = pneg %p272
      // Predicated region
      $region41: #{tpu_custom_call.1} parent=5 // pred_check
        _
      $region42: #{tpu_custom_call.1} parent=5 // pred_check_branch
        %275 = sbr.rel (%p272) target = $region44
      $region43: #{tpu_custom_call.1} parent=5 // pred_region
        %s276 = ssub.s32 %s26, 1
        // Predicated region
        $region45: #{tpu_custom_call.1} parent=43 // pred_check
          %p277 = pneg %p59
        $region46: #{tpu_custom_call.1} parent=43 // pred_check_branch
          %279 = sbr.rel (%p277) target = $region48
        $region47: #{tpu_custom_call.1} parent=43 // pred_region
          %281 = dma.done [#allocation5], 1024
        $region48: #{tpu_custom_call.1} parent=43 // pred_fallthru
          _
        // Predicated region
        $region49: #{tpu_custom_call.1} parent=43 // pred_check
          %p282 = pneg %p106
        $region50: #{tpu_custom_call.1} parent=43 // pred_check_branch
          %284 = sbr.rel (%p282) target = $region52
        $region51: #{tpu_custom_call.1} parent=43 // pred_region
          %286 = dma.done [#allocation8], 128
        $region52: #{tpu_custom_call.1} parent=43 // pred_fallthru
          _
        %p287 = pneg %p59
        %p288 = pneg %p56
        %p289 = pneg %p80
        %p290 = pneg %p77
        %p291 = pneg %p106
        %p292 = pneg %p103
        %p293 = scmp.lt.s32.totalorder %s35, 1
        %s294 = scalar_select %p293, %s35, 1
        %p295 = scmp.lt.s32.totalorder %s36, 0
        %s296 = scalar_select %p295, %s36, 0
        %s297 = sadd.s32 %s296, %s294
        %s298 = smul.addr %s297, 8
        %s299 = scalar_lea.vmem %s4, %s298
        %p300 = pneg %p134
        %p301 = pneg %p131
        %p302 = pneg %p155
        %p303 = pneg %p152
        %p304 = pneg %p176
        %p305 = pneg %p173
        %p306 = pneg %p204
        %p307 = pneg %p201
        %s308 = sand.u32 %s191, 1
        %s309 = scalar_lea.sflag [#allocation6], %s308
        %s310 = sand.u32 %s191, 1
        %s311 = smul.addr %s310, 8
        %s312 = scalar_lea.vmem [#allocation9], %s311
        %p313 = scmp.lt.s32.totalorder %s35, 1
        %s314 = scalar_select %p313, %s35, 1
        %p315 = scmp.lt.s32.totalorder %s36, 0
        %s316 = scalar_select %p315, %s36, 0
        %s317 = sadd.s32 %s316, %s314
        %s318 = smul.addr %s317, 8
        %s319 = scalar_lea.vmem %s4, %s318
        %s320 = smul.u32 %s35, 8
        %s321 = smul.u32 %s36, 8
        %s322 = sadd.s32 %s320, %s321
        %s323 = sld [smem:[#allocation3 + %s322]]
        %s324 = scalar_lea.vmem [#allocation4], %s323
        %v325 = vld [vmem:[%s324] sm:$0x1]
        %326 = vst [vmem:[%s312] sm:$0x1] %v325
        %s327 = sadd.s32 %s322, 1
        %s328 = sld [smem:[#allocation3 + %s327]]
        %s329 = scalar_lea.vmem [#allocation4], %s328
        %v330 = vld [vmem:[%s329] sm:$0x1]
        %331 = vst [vmem:[%s312 + $0x1] sm:$0x1] %v330
        %s332 = sadd.s32 %s322, 2
        %s333 = sld [smem:[#allocation3 + %s332]]
        %s334 = scalar_lea.vmem [#allocation4], %s333
        %v335 = vld [vmem:[%s334] sm:$0x1]
        %336 = vst [vmem:[%s312 + $0x2] sm:$0x1] %v335
        %s337 = sadd.s32 %s322, 3
        %s338 = sld [smem:[#allocation3 + %s337]]
        %s339 = scalar_lea.vmem [#allocation4], %s338
        %v340 = vld [vmem:[%s339] sm:$0x1]
        %341 = vst [vmem:[%s312 + $0x3] sm:$0x1] %v340
        %s342 = sadd.s32 %s322, 4
        %s343 = sld [smem:[#allocation3 + %s342]]
        %s344 = scalar_lea.vmem [#allocation4], %s343
        %v345 = vld [vmem:[%s344] sm:$0x1]
        %346 = vst [vmem:[%s312 + $0x4] sm:$0x1] %v345
        %s347 = sadd.s32 %s322, 5
        %s348 = sld [smem:[#allocation3 + %s347]]
        %s349 = scalar_lea.vmem [#allocation4], %s348
        %v350 = vld [vmem:[%s349] sm:$0x1]
        %351 = vst [vmem:[%s312 + $0x5] sm:$0x1] %v350
        %s352 = sadd.s32 %s322, 6
        %s353 = sld [smem:[#allocation3 + %s352]]
        %s354 = scalar_lea.vmem [#allocation4], %s353
        %v355 = vld [vmem:[%s354] sm:$0x1]
        %356 = vst [vmem:[%s312 + $0x6] sm:$0x1] %v355
        %s357 = sadd.s32 %s322, 7
        %s358 = sld [smem:[#allocation3 + %s357]]
        %s359 = scalar_lea.vmem [#allocation4], %s358
        %v360 = vld [vmem:[%s359] sm:$0x1]
        %361 = vst [vmem:[%s312 + $0x7] sm:$0x1] %v360
        %v362 = vld [vmem:[%s319] sm:$0xff]
        %v363 = vld [vmem:[%s2] sm:$0x3]
        %vm364 = vcmp.eq.s32.totalorder %v362, 0
        %v365 = vsel %vm364, 1, 0
        %v366 = vcvt.s32.f32 %v365
        %368 = vset.pattern.permute.xlu0 0
        %369 = vperm.xlu0 %368, %v366
        %v370 = vpop.permute.xlu0 %369
        %v372 = vperm.slane %v363, 0
        %v373 = vmul.f32 %v370, %v372
        %vm374 = vcmp.eq.s32.totalorder %v362, 1
        %v375 = vsel %vm374, 1, 0
        %v376 = vcvt.s32.f32 %v375
        %378 = vset.pattern.permute.xlu0 0
        %379 = vperm.xlu0 %378, %v376
        %v380 = vpop.permute.xlu0 %379
        %v382 = vperm.slane %v363, 1
        %v383 = vmul.f32 %v380, %v382
        %v384 = vadd.f32 %v373, %v383
        %v385 = vld [vmem:[%s312] sm:$0xff]
        %v386 = vld [vmem:[#allocation7] sm:$0xff]
        %v387 = vadd.f32 %v385, %v386
        %v388 = vadd.f32 %v387, %v384
        %389 = vadd.xlane.f32.xlu0 %v388
        %v390 = vpop.xlane.xlu0 %389
        %v391 = vmul.f32 %v390, 0.0078125
        %v392 = vmul.f32 %v388, %v388
        %393 = vadd.xlane.f32.xlu0 %v392
        %v394 = vpop.xlane.xlu0 %393
        %v395 = vmul.f32 %v394, 0.0078125
        %v396 = vmul.f32 %v391, %v391
        %v397 = vsub.f32 %v395, %v396
        %v398 = vmax.f32 %v397, 0.0
        %v399 = vsub.f32 %v388, %v391
        %v400 = vadd.f32 %v398, 1e-12
        %v401 = vrsqrt.pop %v400
        %v402 = vmul.f32 %v401, %v400
        %v403 = vmul.f32 %v402, %v401
        %v404 = vmul.f32 0.5, %v403
        %v405 = vsub.f32 1.5, %v404
        %v406 = vmul.f32 %v401, %v405
        %vm407 = vweird.f32 %v400
        %vm408 = vweird.f32 %v401
        %vm409 = vmor %vm407, %vm408
        %v410 = vsel %vm409, %v401, %v406
        %v411 = vmul.f32 %v399, %v410
        %v412 = vld [vmem:[%s5] sm:$0x1]
        %v414 = vperm.slane %v412, 0
        %v416 = vmul.f32 %v411, %v414
        %v417 = vld [vmem:[%s6] sm:$0x1]
        %v419 = vperm.slane %v417, 0
        %v421 = vadd.f32 %v416, %v419
        %422 = vst [vmem:[%s312] sm:$0xff] %v421
        %s423 = sand.u32 %s191, 1
        %s424 = scalar_lea.sflag [#allocation6], %s423
        %s425 = sand.u32 %s191, 1
        %s426 = smul.addr %s425, 8
        %s427 = scalar_lea.vmem [#allocation9], %s426
        // Predicated region
        $region53: #{tpu_custom_call.1} parent=43 // pred_check
          %p428 = pneg %p201
        $region54: #{tpu_custom_call.1} parent=43 // pred_check_branch
          %430 = sbr.rel (%p428) target = $region56
        $region55: #{tpu_custom_call.1} parent=43 // pred_region
          %432 = vsyncadd %s424, 0
          %s433 = sadd.s32 %s36, %s35
          %s434 = smul.addr %s433, 8
          %s435 = scalar_lea.hbm %s7, %s434
          %s437 = sshll.u32 %s427, 4
          %s438 = int_to_ptr.vmem [resolvable:$true] %s437
          %s439 = sshll.u32 %s435, 4
          %s440 = int_to_ptr.hbm [resolvable:$true] %s439
          %442 = dma.vmem_to_hbm [thread:$0]  %s438, 128, %s440, %s424
        $region56: #{tpu_custom_call.1} parent=43 // pred_fallthru
          _
      $region44: #{tpu_custom_call.1} parent=5 // pred_fallthru
        _
      %p443 = scmp.le.s32.totalorder 2, %s26
      // Predicated region
      $region57: #{tpu_custom_call.1} parent=5 // pred_check
        %p444 = pneg %p443
      $region58: #{tpu_custom_call.1} parent=5 // pred_check_branch
        %446 = sbr.rel (%p444) target = $region60
      $region59: #{tpu_custom_call.1} parent=5 // pred_region
        %s447 = ssub.s32 %s26, 2
        // Predicated region
        $region61: #{tpu_custom_call.1} parent=59 // pred_check
          %p448 = pneg %p207
        $region62: #{tpu_custom_call.1} parent=59 // pred_check_branch
          %450 = sbr.rel (%p448) target = $region64
        $region63: #{tpu_custom_call.1} parent=59 // pred_region
          %s451 = sand.u32 %s192, 1
          %s452 = scalar_lea.sflag [#allocation6], %s451
          %s453 = sand.u32 %s192, 1
          %s454 = smul.addr %s453, 8
          %s455 = scalar_lea.vmem [#allocation9], %s454
          %457 = dma.done %s452, 128
        $region64: #{tpu_custom_call.1} parent=59 // pred_fallthru
          _
      $region60: #{tpu_custom_call.1} parent=5 // pred_fallthru
        _
    $region6: #{tpu_custom_call.1} parent=1 // loop_footer
      %s30 = sadd.s32 1, %s26
    $region7: #{tpu_custom_call.1} parent=1 // loop_footer_branch
      %25 = sbr.rel target = $region3
    $region8: #{tpu_custom_call.1} parent=1 // loop_exit
      _
    %458 = vsyncpa [#allocation5], 1
    %s459 = scalar_lea.sflag [#allocation5], 1
    %460 = vsyncpa %s459, 1
    %461 = vsyncpa [#allocation8], 1
    %462 = vsyncpa [#allocation6], 1
    %s463 = scalar_lea.sflag [#allocation6], 1
    %464 = vsyncpa %s463, 1

</llo_original>
